<compile_context>
chip_gen: v6e
topology: v6e:2x2x1
jax: 0.10.0
libtpu: 0.0.40
codegen_flags: <defaults>
</compile_context>

<pallas_src>
import jax
import jax.numpy as jnp
from jax.experimental import pallas as pl
from jax.experimental.pallas import tpu as pltpu

LANE = 128
LOG_STD_MIN = -20.0
LOG_STD_MAX = 2.0


def _round_up(x, m):
    return (x + m - 1) // m * m


def policy_kernel(x_ref, w_ref, b_ref, out_ref):
    x = x_ref[...]          # (TB, lane) bf16, zero-padded past num_inputs
    b = b_ref[...]          # (5, lane)  f32

    # linear1 + ReLU  (bf16 operands -> MXU, f32 accumulate; VPU ops in f32)
    h = jnp.dot(x, w_ref[0], preferred_element_type=jnp.float32) + b[0]
    h = jnp.maximum(h, 0.0)

    # linear2 + ReLU
    h = jnp.dot(h.astype(jnp.bfloat16), w_ref[1],
                preferred_element_type=jnp.float32) + b[1]
    h = jnp.maximum(h, 0.0)

    # fused heads: cols [0, A) = mean, cols [A, 2A) = log_std, rest zero padding
    out = jnp.dot(h.astype(jnp.bfloat16), w_ref[2],
                  preferred_element_type=jnp.float32) + b[2]

    # per-column clamp: (-inf, +inf) on mean/padding columns, (-20, 2) on log_std
    out = jnp.clip(out, b[3], b[4])

    out_ref[...] = out.astype(out_ref.dtype)  # single lane-dense unmasked store


def policy_forward(state, packed, *, block_b=512, out_dtype=jnp.float32):
    """state: (B, num_inputs). Returns (mean, log_std), each (B, num_actions)."""
    W, b = packed["W"], packed["b"]
    nin = packed["num_inputs"]
    na = packed["num_actions"]
    lane = W.shape[-1]
    B = state.shape[0]

    # Batch tiling: multiple of 8 (f32/bf16 sublane rule), big tiles for HBM
    # roofline, and >= 2 grid steps when B > 128 so v7x uses both TensorCores.
    block_b = max(8, _round_up(int(block_b), 8))
    B_r8 = _round_up(B, 8)
    TB = min(block_b, B_r8)
    if B > 128:
        TB = min(TB, _round_up((B_r8 + 1) // 2, 8))
    B_pad = _round_up(B_r8, TB)
    grid = (B_pad // TB,)

    # lane-dense, zero-padded bf16 input slab (zero padding contributes exactly 0)
    x = jnp.zeros((B_pad, lane), jnp.bfloat16).at[:B, :nin].set(
        state.astype(jnp.bfloat16))

    out_itemsize = jnp.dtype(out_dtype).itemsize
    cost = pl.CostEstimate(
        flops=2 * B_pad * lane * lane * 3,
        transcendentals=0,
        bytes_accessed=int(W.size) * W.dtype.itemsize
        + int(b.size) * b.dtype.itemsize
        + B_pad * lane * 2                      # bf16 input read
        + B_pad * lane * out_itemsize,          # output write
    )

    out = pl.pallas_call(
        policy_kernel,
        out_shape=jax.ShapeDtypeStruct((B_pad, lane), out_dtype),
        grid=grid,
        in_specs=[
            pl.BlockSpec((TB, lane), lambda i: (i, 0)),          # state rows: sharded
            pl.BlockSpec((3, lane, lane), lambda i: (0, 0, 0)),  # packed weights: resident
            pl.BlockSpec((5, lane), lambda i: (0, 0)),           # biases + clamp bounds
        ],
        out_specs=pl.BlockSpec((TB, lane), lambda i: (i, 0)),
        compiler_params=pltpu.CompilerParams(
            dimension_semantics=("parallel",)),
        cost_estimate=cost,
    )(x, W, b)

    mean = out[:B, :na]
    log_std = out[:B, na:2 * na]
    return mean, log_std


def init_params(key, num_inputs, num_actions, hidden_size, init_w=0.003):
    """Raw f32 params mirroring the PyTorch module; weights stored as (in, out)."""
    ks = jax.random.split(key, 8)

    def linear_default(kw, kb, fan_in, fan_out):
        bound = 1.0 / jnp.sqrt(jnp.float32(fan_in))
        w = jax.random.uniform(kw, (fan_in, fan_out), jnp.float32, -bound, bound)
        bb = jax.random.uniform(kb, (1, fan_out), jnp.float32, -bound, bound)
        return w, bb

    def linear_small(kw, kb, fan_in, fan_out):
        w = jax.random.uniform(kw, (fan_in, fan_out), jnp.float32, -init_w, init_w)
        bb = jax.random.uniform(kb, (1, fan_out), jnp.float32, -init_w, init_w)
        return w, bb

    w1, b1 = linear_default(ks[0], ks[1], num_inputs, hidden_size)
    w2, b2 = linear_default(ks[2], ks[3], hidden_size, hidden_size)
    wm, bm = linear_small(ks[4], ks[5], hidden_size, num_actions)
    ws, bs = linear_small(ks[6], ks[7], hidden_size, num_actions)
    return dict(w1=w1, b1=b1, w2=w2, b2=b2, wm=wm, bm=bm, ws=ws, bs=bs)


def pack_params(raw):
    """One-time padding/packing into lane-dense slabs (done at init, not per call)."""
    nin, hidden = raw["w1"].shape
    na = raw["wm"].shape[1]
    lane = _round_up(max(nin, hidden, 2 * na, 1), LANE)

    W = jnp.zeros((3, lane, lane), jnp.float32)
    W = W.at[0, :nin, :hidden].set(raw["w1"])
    W = W.at[1, :hidden, :hidden].set(raw["w2"])
    W = W.at[2, :hidden, :na].set(raw["wm"])
    W = W.at[2, :hidden, na:2 * na].set(raw["ws"])

    b = jnp.zeros((5, lane), jnp.float32)
    b = b.at[0, :hidden].set(raw["b1"][0])
    b = b.at[1, :hidden].set(raw["b2"][0])
    b = b.at[2, :na].set(raw["bm"][0])
    b = b.at[2, na:2 * na].set(raw["bs"][0])
    # per-column clamp bounds: only the log_std columns get finite bounds
    clamp_lo = jnp.full((lane,), -jnp.inf, jnp.float32).at[na:2 * na].set(LOG_STD_MIN)
    clamp_hi = jnp.full((lane,), jnp.inf, jnp.float32).at[na:2 * na].set(LOG_STD_MAX)
    b = b.at[3].set(clamp_lo)
    b = b.at[4].set(clamp_hi)

    return {"W": W.astype(jnp.bfloat16), "b": b,
            "num_inputs": nin, "hidden": hidden, "num_actions": na}


def reference_forward_bf16(state, raw):
    """Emulates the kernel numerics: bf16 MXU operands, f32 accumulation."""
    bf = jnp.bfloat16

    def mm(x, w):
        return jnp.dot(x.astype(bf), w.astype(bf),
                       preferred_element_type=jnp.float32)

    h1 = jnp.maximum(mm(state, raw["w1"]) + raw["b1"], 0.0)
    h2 = jnp.maximum(mm(h1, raw["w2"]) + raw["b2"], 0.0)
    mean = mm(h2, raw["wm"]) + raw["bm"]
    log_std = jnp.clip(mm(h2, raw["ws"]) + raw["bs"], LOG_STD_MIN, LOG_STD_MAX)
    return mean, log_std


def reference_forward_f32(state, raw):
    h1 = jnp.maximum(state @ raw["w1"] + raw["b1"], 0.0)
    h2 = jnp.maximum(h1 @ raw["w2"] + raw["b2"], 0.0)
    mean = h2 @ raw["wm"] + raw["bm"]
    log_std = jnp.clip(h2 @ raw["ws"] + raw["bs"], LOG_STD_MIN, LOG_STD_MAX)
    return mean, log_std


if __name__ == "__main__":
    key = jax.random.PRNGKey(0)
    k_state, k_params, k_big = jax.random.split(key, 3)

    batch = 8
    num_inputs = 16
    num_actions = 8
    hidden_size = 32

    raw = init_params(k_params, num_inputs, num_actions, hidden_size)
    packed = pack_params(raw)

    # Small batch: single grid step (effectively gridless).
    state = jax.random.normal(k_state, (batch, num_inputs), jnp.float32)
    mean, log_std = policy_forward(state, packed)
    jax.block_until_ready((mean, log_std))

    mean_ref, log_std_ref = reference_forward_bf16(state, raw)
    mean_f32, log_std_f32 = reference_forward_f32(state, raw)
    assert mean.shape == (batch, num_actions)
    assert log_std.shape == (batch, num_actions)
    assert jnp.allclose(mean, mean_ref, atol=2e-3, rtol=2e-3)
    assert jnp.allclose(log_std, log_std_ref, atol=2e-3, rtol=2e-3)
    assert jnp.allclose(mean, mean_f32, atol=3e-2, rtol=3e-2)
    assert jnp.allclose(log_std, log_std_f32, atol=3e-2, rtol=3e-2)

    # Larger batch: exercises the parallel batch grid (2 blocks -> both v7x TCs).
    big_state = jax.random.normal(k_big, (200, num_inputs), jnp.float32)
    mean_b, log_std_b = policy_forward(big_state, packed)
    jax.block_until_ready((mean_b, log_std_b))
    mean_b_ref, log_std_b_ref = reference_forward_bf16(big_state, raw)
    assert mean_b.shape == (200, num_actions)
    assert jnp.allclose(mean_b, mean_b_ref, atol=2e-3, rtol=2e-3)
    assert jnp.allclose(log_std_b, log_std_b_ref, atol=2e-3, rtol=2e-3)

    # Optional bf16 output slab (halves output HBM writes; looser tolerance).
    mean_h, log_std_h = policy_forward(big_state, packed, out_dtype=jnp.bfloat16)
    jax.block_until_ready((mean_h, log_std_h))
    assert jnp.allclose(mean_h.astype(jnp.float32), mean_b_ref, atol=5e-2, rtol=5e-2)
    assert jnp.allclose(log_std_h.astype(jnp.float32), log_std_b_ref,
                        atol=5e-2, rtol=5e-2)

    # TODO(synk): evaluate()/get_action() Normal sampling + tanh squash are host/JAX-side,
    # not part of this forward kernel.
    print("KERNEL_OK")
</pallas_src>

<mosaic_0001>
module attributes {stable_mosaic.version = 11 : i64} {
  func.func @policy_kernel(%arg0: i32, %arg1: memref<8x128xbf16, #tpu.memory_space<vmem>>, %arg2: memref<3x128x128xbf16, #tpu.memory_space<vmem>>, %arg3: memref<5x128xf32, #tpu.memory_space<vmem>>, %arg4: memref<8x128xf32, #tpu.memory_space<vmem>>) attributes {dimension_semantics = [#tpu.dimension_semantics<parallel>], iteration_bounds = array<i64: 1>, scalar_prefetch = 0 : i64, scratch_operands = 0 : i64, tpu.core_type = #tpu.core_type<tc>, window_params = [{transform_indices = @transform_0, window_bounds = array<i64: 8, 128>}, {pipeline_mode = #tpu.pipeline_mode<synchronous>, transform_indices = @transform_1, window_bounds = array<i64: 3, 128, 128>}, {pipeline_mode = #tpu.pipeline_mode<synchronous>, transform_indices = @transform_2, window_bounds = array<i64: 5, 128>}, {transform_indices = @transform_3, window_bounds = array<i64: 8, 128>}]} {
    %c0 = arith.constant 0 : index
    %c0_0 = arith.constant 0 : index
    %0 = vector.load %arg1[%c0, %c0_0] : memref<8x128xbf16, #tpu.memory_space<vmem>>, vector<8x128xbf16>
    %c0_1 = arith.constant 0 : index
    %c0_2 = arith.constant 0 : index
    %1 = vector.load %arg3[%c0_1, %c0_2] : memref<5x128xf32, #tpu.memory_space<vmem>>, vector<5x128xf32>
    %c0_3 = arith.constant 0 : index
    %c0_4 = arith.constant 0 : index
    %c0_5 = arith.constant 0 : index
    %2 = vector.load %arg2[%c0_3, %c0_4, %c0_5] : memref<3x128x128xbf16, #tpu.memory_space<vmem>>, vector<1x128x128xbf16>
    %3 = vector.shape_cast %2 : vector<1x128x128xbf16> to vector<128x128xbf16>
    %cst = arith.constant dense<0.000000e+00> : vector<8x128xf32>
    %4 = tpu.matmul %0, %3, %cst {dimension_numbers = #tpu.dot_dimension_numbers<[1], [0], [0], [1], [0, 0, 1, 1], [], []>} : vector<8x128xbf16>, vector<128x128xbf16>, vector<8x128xf32> -> vector<8x128xf32>
    %5 = vector.extract_strided_slice %1 {offsets = [0, 0], sizes = [1, 128], strides = [1, 1]} : vector<5x128xf32> to vector<1x128xf32>
    %6 = vector.shape_cast %5 : vector<1x128xf32> to vector<128xf32>
    %7 = vector.shape_cast %6 : vector<128xf32> to vector<1x128xf32>
    %8 = vector.broadcast %7 : vector<1x128xf32> to vector<8x128xf32>
    %9 = arith.addf %4, %8 : vector<8x128xf32>
    %cst_6 = arith.constant 0.000000e+00 : f32
    %10 = vector.broadcast %cst_6 : f32 to vector<8x128xf32>
    %11 = arith.maximumf %9, %10 : vector<8x128xf32>
    %12 = arith.truncf %11 : vector<8x128xf32> to vector<8x128xbf16>
    %c1 = arith.constant 1 : index
    %c0_7 = arith.constant 0 : index
    %c0_8 = arith.constant 0 : index
    %13 = vector.load %arg2[%c1, %c0_7, %c0_8] : memref<3x128x128xbf16, #tpu.memory_space<vmem>>, vector<1x128x128xbf16>
    %14 = vector.shape_cast %13 : vector<1x128x128xbf16> to vector<128x128xbf16>
    %cst_9 = arith.constant dense<0.000000e+00> : vector<8x128xf32>
    %15 = tpu.matmul %12, %14, %cst_9 {dimension_numbers = #tpu.dot_dimension_numbers<[1], [0], [0], [1], [0, 0, 1, 1], [], []>} : vector<8x128xbf16>, vector<128x128xbf16>, vector<8x128xf32> -> vector<8x128xf32>
    %16 = vector.extract_strided_slice %1 {offsets = [1, 0], sizes = [1, 128], strides = [1, 1]} : vector<5x128xf32> to vector<1x128xf32>
    %17 = vector.shape_cast %16 : vector<1x128xf32> to vector<128xf32>
    %18 = vector.shape_cast %17 : vector<128xf32> to vector<1x128xf32>
    %19 = vector.broadcast %18 : vector<1x128xf32> to vector<8x128xf32>
    %20 = arith.addf %15, %19 : vector<8x128xf32>
    %cst_10 = arith.constant 0.000000e+00 : f32
    %21 = vector.broadcast %cst_10 : f32 to vector<8x128xf32>
    %22 = arith.maximumf %20, %21 : vector<8x128xf32>
    %23 = arith.truncf %22 : vector<8x128xf32> to vector<8x128xbf16>
    %c2 = arith.constant 2 : index
    %c0_11 = arith.constant 0 : index
    %c0_12 = arith.constant 0 : index
    %24 = vector.load %arg2[%c2, %c0_11, %c0_12] : memref<3x128x128xbf16, #tpu.memory_space<vmem>>, vector<1x128x128xbf16>
    %25 = vector.shape_cast %24 : vector<1x128x128xbf16> to vector<128x128xbf16>
    %cst_13 = arith.constant dense<0.000000e+00> : vector<8x128xf32>
    %26 = tpu.matmul %23, %25, %cst_13 {dimension_numbers = #tpu.dot_dimension_numbers<[1], [0], [0], [1], [0, 0, 1, 1], [], []>} : vector<8x128xbf16>, vector<128x128xbf16>, vector<8x128xf32> -> vector<8x128xf32>
    %27 = vector.extract_strided_slice %1 {offsets = [2, 0], sizes = [1, 128], strides = [1, 1]} : vector<5x128xf32> to vector<1x128xf32>
    %28 = vector.shape_cast %27 : vector<1x128xf32> to vector<128xf32>
    %29 = vector.shape_cast %28 : vector<128xf32> to vector<1x128xf32>
    %30 = vector.broadcast %29 : vector<1x128xf32> to vector<8x128xf32>
    %31 = arith.addf %26, %30 : vector<8x128xf32>
    %32 = vector.extract_strided_slice %1 {offsets = [3, 0], sizes = [1, 128], strides = [1, 1]} : vector<5x128xf32> to vector<1x128xf32>
    %33 = vector.shape_cast %32 : vector<1x128xf32> to vector<128xf32>
    %34 = vector.extract_strided_slice %1 {offsets = [4, 0], sizes = [1, 128], strides = [1, 1]} : vector<5x128xf32> to vector<1x128xf32>
    %35 = vector.shape_cast %34 : vector<1x128xf32> to vector<128xf32>
    %36 = vector.shape_cast %33 : vector<128xf32> to vector<1x128xf32>
    %37 = vector.broadcast %36 : vector<1x128xf32> to vector<8x128xf32>
    %38 = arith.maximumf %37, %31 : vector<8x128xf32>
    %39 = vector.shape_cast %35 : vector<128xf32> to vector<1x128xf32>
    %40 = vector.broadcast %39 : vector<1x128xf32> to vector<8x128xf32>
    %41 = arith.minimumf %40, %38 : vector<8x128xf32>
    %c0_14 = arith.constant 0 : index
    %c0_15 = arith.constant 0 : index
    %42 = vector.load %arg4[%c0_14, %c0_15] : memref<8x128xf32, #tpu.memory_space<vmem>>, vector<8x128xf32>
    tpu.vector_store %arg4[%c0_14, %c0_15], %41 {strides = array<i32>} : memref<8x128xf32, #tpu.memory_space<vmem>>, vector<8x128xf32>,
    return
  }
  func.func @transform_0(%arg0: i32) -> (i32, i32) {
    %c0_i32 = arith.constant 0 : i32
    %c0_i32_0 = arith.constant 0 : i32
    return %arg0, %c0_i32 : i32, i32
  }
  func.func @transform_1(%arg0: i32) -> (i32, i32, i32) {
    %c0_i32 = arith.constant 0 : i32
    %c0_i32_0 = arith.constant 0 : i32
    %c0_i32_1 = arith.constant 0 : i32
    %c0_i32_2 = arith.constant 0 : i32
    return %c0_i32, %c0_i32_0, %c0_i32_1 : i32, i32, i32
  }
  func.func @transform_2(%arg0: i32) -> (i32, i32) {
    %c0_i32 = arith.constant 0 : i32
    %c0_i32_0 = arith.constant 0 : i32
    %c0_i32_1 = arith.constant 0 : i32
    return %c0_i32, %c0_i32_0 : i32, i32
  }
  func.func @transform_3(%arg0: i32) -> (i32, i32) {
    %c0_i32 = arith.constant 0 : i32
    %c0_i32_0 = arith.constant 0 : i32
    return %arg0, %c0_i32 : i32, i32
  }
}

</mosaic_0001>

<llo_original>
// kernel: tpu_custom_call.1
$region0: #{tpu_custom_call.1}
  #allocation0 [shape = 'u32[]', space=smem, size = 0x4, offset = 0x4, fixed_abs, tag = 'smem constant byte address 0x4 - core index']
  #allocation1 [shape = 'u32[144,128]{1,0:T(1,128)}', space=vmem, size = 0x12000, scoped, tag = 'internal scratch']
  %s0 = inlined_call_operand.hbm [shape: bf16[8,128], index: 0, kind: input, shape index: {}]
  %s1 = inlined_call_operand.hbm [shape: bf16[3,128,128], index: 1, kind: input, shape index: {}]
  %s2 = inlined_call_operand.hbm [shape: f32[5,128], index: 2, kind: input, shape index: {}]
  %s3 = inlined_call_operand.hbm [shape: f32[8,128], index: 3, kind: output, shape index: {}]
  %s4 = sld [smem:[#allocation0]]
  $region34: #{tpu_custom_call.1} parent=0
    _
  %s6 = ssub.s32 1, %s4
  %s7 = scalar_select 0, %s6, %s4
  $region1: #{tpu_custom_call.1} parent=0
    #allocation2 [shape = 'u8[2048]{0}', space=vmem, size = 0x800, scoped, tag = 'input window, operand 0, single buffered']
    #allocation3 [shape = 's32[1]{0}', space=sflag, size = 0x4, scoped, tag = 'scoped memory for tpu_custom_call.1']
    #allocation4 [shape = 's32[1]{0}', space=sflag, size = 0x4, scoped, tag = 'scoped memory for tpu_custom_call.1']
    #allocation5 [shape = 'u8[98304]{0}', space=vmem, size = 0x18000, scoped, tag = 'input window, operand 1, single buffered']
    #allocation6 [shape = 's32[1]{0}', space=sflag, size = 0x4, scoped, tag = 'scoped memory for tpu_custom_call.1']
    #allocation7 [shape = 'u8[4096]{0}', space=vmem, size = 0x1000, scoped, tag = 'input window, operand 2, single buffered']
    #allocation8 [shape = 'u8[4096]{0}', space=vmem, size = 0x1000, scoped, tag = 'output window, operand 0, single buffered']
    %8 = vsyncpa [#allocation3], 0
    %9 = vsyncpa [#allocation6], 0
    %10 = vsyncpa [#allocation4], 0
    // Predicated region
    $region2: #{tpu_custom_call.1} parent=1 // pred_check
      _
    $region3: #{tpu_custom_call.1} parent=1 // pred_check_branch
      %12 = sbr.rel (0) target = $region5
    $region4: #{tpu_custom_call.1} parent=1 // pred_region
      %s14 = ssub.s32 64, 64
      %15 = vsyncadd [#allocation3], %s14
      %s17 = sshll.u32 [#allocation2], 4
      %s18 = int_to_ptr.vmem [resolvable:$true] %s17
      %20 = dma.hbm_to_vmem [thread:$0]  %s0, 64, %s18, [#allocation3]
    $region5: #{tpu_custom_call.1} parent=1 // pred_fallthru
      _
    // Predicated region
    $region6: #{tpu_custom_call.1} parent=1 // pred_check
      _
    $region7: #{tpu_custom_call.1} parent=1 // pred_check_branch
      %22 = sbr.rel (0) target = $region9
    $region8: #{tpu_custom_call.1} parent=1 // pred_region
      %s24 = ssub.s32 3072, 3072
      %25 = vsyncadd [#allocation6], %s24
      %s26 = sshll.u32 [#allocation5], 4
      %s27 = int_to_ptr.vmem [resolvable:$true] %s26
      %32 = dma.hbm_to_vmem [thread:$0]  %s1, 3072, %s27, [#allocation6], 64, 64, 4
    $region9: #{tpu_custom_call.1} parent=1 // pred_fallthru
      _
    // Predicated region
    $region10: #{tpu_custom_call.1} parent=1 // pred_check
      _
    $region11: #{tpu_custom_call.1} parent=1 // pred_check_branch
      %34 = sbr.rel (0) target = $region13
    $region12: #{tpu_custom_call.1} parent=1 // pred_region
      %s36 = ssub.s32 128, 128
      %37 = vsyncadd [#allocation6], %s36
      %s39 = sshll.u32 [#allocation7], 4
      %s40 = int_to_ptr.vmem [resolvable:$true] %s39
      %42 = dma.hbm_to_vmem [thread:$0]  %s2, 128, %s40, [#allocation6]
    $region13: #{tpu_custom_call.1} parent=1 // pred_fallthru
      _
    // Predicated region
    $region14: #{tpu_custom_call.1} parent=1 // pred_check
      _
    $region15: #{tpu_custom_call.1} parent=1 // pred_check_branch
      %44 = sbr.rel (0) target = $region17
    $region16: #{tpu_custom_call.1} parent=1 // pred_region
      %45 = dma.done [#allocation3], 64
    $region17: #{tpu_custom_call.1} parent=1 // pred_fallthru
      _
    // Predicated region
    $region18: #{tpu_custom_call.1} parent=1 // pred_check
      _
    $region19: #{tpu_custom_call.1} parent=1 // pred_check_branch
      %47 = sbr.rel (0) target = $region21
    $region20: #{tpu_custom_call.1} parent=1 // pred_region
      %48 = dma.done [#allocation6], 3072
    $region21: #{tpu_custom_call.1} parent=1 // pred_fallthru
      _
    // Predicated region
    $region22: #{tpu_custom_call.1} parent=1 // pred_check
      _
    $region23: #{tpu_custom_call.1} parent=1 // pred_check_branch
      %50 = sbr.rel (0) target = $region25
    $region24: #{tpu_custom_call.1} parent=1 // pred_region
      %51 = dma.done [#allocation6], 128
    $region25: #{tpu_custom_call.1} parent=1 // pred_fallthru
      _
    %v53 = vld [vmem:[#allocation2] sm:$0xf]
    %v54 = vld [vmem:[#allocation7] sm:$0x1f]
    %v55 = vld [vmem:[#allocation5] sm:$0xf]
    %v56 = vld [vmem:[#allocation5 + $0x4] sm:$0xf]
    %v57 = vld [vmem:[#allocation5 + $0x8] sm:$0xf]
    %v58 = vld [vmem:[#allocation5 + $0xc] sm:$0xf]
    %v59 = vld [vmem:[#allocation5 + $0x10] sm:$0xf]
    %v60 = vld [vmem:[#allocation5 + $0x14] sm:$0xf]
    %v61 = vld [vmem:[#allocation5 + $0x18] sm:$0xf]
    %v62 = vld [vmem:[#allocation5 + $0x1c] sm:$0xf]
    %v63 = vld [vmem:[#allocation5 + $0x20] sm:$0xf]
    %v64 = vld [vmem:[#allocation5 + $0x24] sm:$0xf]
    %v65 = vld [vmem:[#allocation5 + $0x28] sm:$0xf]
    %v66 = vld [vmem:[#allocation5 + $0x2c] sm:$0xf]
    %v67 = vld [vmem:[#allocation5 + $0x30] sm:$0xf]
    %v68 = vld [vmem:[#allocation5 + $0x34] sm:$0xf]
    %v69 = vld [vmem:[#allocation5 + $0x38] sm:$0xf]
    %v70 = vld [vmem:[#allocation5 + $0x3c] sm:$0xf]
    %v71 = vlaneseq
    %v72 = vshrl.u32 %v71, 7
    %v73 = vsub.s32 0, %v72
    %v74 = vrot.slane %v54, %v73
    %v91 = vunpack.c.l.b16 %v55
    %v92 = vunpack.c.l.b16 %v56
    %v93 = vunpack.c.l.b16 %v57
    %v94 = vunpack.c.l.b16 %v58
    %v95 = vunpack.c.l.b16 %v59
    %v96 = vunpack.c.l.b16 %v60
    %v97 = vunpack.c.l.b16 %v61
    %v98 = vunpack.c.l.b16 %v62
    %v99 = vunpack.c.l.b16 %v63
    %v100 = vunpack.c.l.b16 %v64
    %v101 = vunpack.c.l.b16 %v65
    %v102 = vunpack.c.l.b16 %v66
    %v103 = vunpack.c.l.b16 %v67
    %v104 = vunpack.c.l.b16 %v68
    %v105 = vunpack.c.l.b16 %v69
    %v106 = vunpack.c.l.b16 %v70
    %v107 = vpack.c.b16 %v92, %v91
    %v108 = vpack.c.b16 %v94, %v93
    %v109 = vpack.c.b16 %v96, %v95
    %v110 = vpack.c.b16 %v98, %v97
    %v111 = vpack.c.b16 %v100, %v99
    %v112 = vpack.c.b16 %v102, %v101
    %v113 = vpack.c.b16 %v104, %v103
    %v114 = vpack.c.b16 %v106, %v105
    %123 = vmatprep.subr.bf16.mxu0 0
    %124 = vmatpush1.bf16.msra.mxu0 %v114
    %125 = vmatprep.subr.bf16.mxu0 0
    %126 = vmatpush1.bf16.msra.mxu0 %v113
    %127 = vmatprep.subr.bf16.mxu0 0
    %128 = vmatpush1.bf16.msra.mxu0 %v112
    %129 = vmatprep.subr.bf16.mxu0 0
    %130 = vmatpush1.bf16.msra.mxu0 %v111
    %131 = vmatprep.subr.bf16.mxu0 0
    %132 = vmatpush1.bf16.msra.mxu0 %v110
    %133 = vmatprep.subr.bf16.mxu0 0
    %134 = vmatpush1.bf16.msra.mxu0 %v109
    %135 = vmatprep.subr.bf16.mxu0 0
    %136 = vmatpush1.bf16.msra.mxu0 %v108
    %137 = vmatprep.subr.bf16.mxu0 0
    %138 = vmatpush1.bf16.msra.mxu0 %v107
    %139 = vmatprep.subr.bf16.mxu0 0
    %140 = vmatpush2.bf16.msra.mxu0 0
    %141 = vmatprep.subr.bf16.mxu0 0
    %142 = vmatpush2.bf16.msra.mxu0 0
    %143 = vmatprep.subr.bf16.mxu0 0
    %144 = vmatpush2.bf16.msra.mxu0 0
    %145 = vmatprep.subr.bf16.mxu0 0
    %146 = vmatpush2.bf16.msra.mxu0 0
    %147 = vmatprep.subr.bf16.mxu0 0
    %148 = vmatpush2.bf16.msra.mxu0 0
    %149 = vmatprep.subr.bf16.mxu0 0
    %150 = vmatpush2.bf16.msra.mxu0 0
    %151 = vmatprep.subr.bf16.mxu0 0
    %152 = vmatpush2.bf16.msra.mxu0 0
    %153 = vmatprep.subr.bf16.mxu0 0
    %154 = vmatpush2.bf16.msra.mxu0 0
    %155 = vmatprep.mubr.bf16.mxu0 0
    %156 = vmatmul.mubr.bf16.gmra.mxu0 %v53
    %v157 = vpop.f32.mrf.mxu0
    %v158 = vadd.f32 %v74, %v157
    %v159 = vpop.f32.mrf.mxu0
    %v160 = vpop.f32.mrf.mxu0
    %v161 = vpop.f32.mrf.mxu0
    %162 = vdwg.mxu0
    %v163 = vmax.f32 %v158, 0.0
    %v164 = vpack.c.bf16 %v163, %v163
    %s165 = scalar_lea.vmem [#allocation5], 64
    %v166 = vld [vmem:[%s165] sm:$0xf]
    %v167 = vld [vmem:[%s165 + $0x4] sm:$0xf]
    %v168 = vld [vmem:[%s165 + $0x8] sm:$0xf]
    %v169 = vld [vmem:[%s165 + $0xc] sm:$0xf]
    %v170 = vld [vmem:[%s165 + $0x10] sm:$0xf]
    %v171 = vld [vmem:[%s165 + $0x14] sm:$0xf]
    %v172 = vld [vmem:[%s165 + $0x18] sm:$0xf]
    %v173 = vld [vmem:[%s165 + $0x1c] sm:$0xf]
    %v174 = vld [vmem:[%s165 + $0x20] sm:$0xf]
    %v175 = vld [vmem:[%s165 + $0x24] sm:$0xf]
    %v176 = vld [vmem:[%s165 + $0x28] sm:$0xf]
    %v177 = vld [vmem:[%s165 + $0x2c] sm:$0xf]
    %v178 = vld [vmem:[%s165 + $0x30] sm:$0xf]
    %v179 = vld [vmem:[%s165 + $0x34] sm:$0xf]
    %v180 = vld [vmem:[%s165 + $0x38] sm:$0xf]
    %v181 = vld [vmem:[%s165 + $0x3c] sm:$0xf]
    %v182 = vlaneseq
    %v183 = vshrl.u32 %v182, 7
    %v184 = vsub.s32 1, %v183
    %v185 = vrot.slane %v54, %v184
    %v202 = vunpack.c.l.b16 %v166
    %v203 = vunpack.c.l.b16 %v167
    %v204 = vunpack.c.l.b16 %v168
    %v205 = vunpack.c.l.b16 %v169
    %v206 = vunpack.c.l.b16 %v170
    %v207 = vunpack.c.l.b16 %v171
    %v208 = vunpack.c.l.b16 %v172
    %v209 = vunpack.c.l.b16 %v173
    %v210 = vunpack.c.l.b16 %v174
    %v211 = vunpack.c.l.b16 %v175
    %v212 = vunpack.c.l.b16 %v176
    %v213 = vunpack.c.l.b16 %v177
    %v214 = vunpack.c.l.b16 %v178
    %v215 = vunpack.c.l.b16 %v179
    %v216 = vunpack.c.l.b16 %v180
    %v217 = vunpack.c.l.b16 %v181
    %v218 = vpack.c.b16 %v203, %v202
    %v219 = vpack.c.b16 %v205, %v204
    %v220 = vpack.c.b16 %v207, %v206
    %v221 = vpack.c.b16 %v209, %v208
    %v222 = vpack.c.b16 %v211, %v210
    %v223 = vpack.c.b16 %v213, %v212
    %v224 = vpack.c.b16 %v215, %v214
    %v225 = vpack.c.b16 %v217, %v216
    %234 = vmatprep.subr.bf16.mxu0 0
    %235 = vmatpush1.bf16.msra.mxu0 %v225
    %236 = vmatprep.subr.bf16.mxu0 0
    %237 = vmatpush1.bf16.msra.mxu0 %v224
    %238 = vmatprep.subr.bf16.mxu0 0
    %239 = vmatpush1.bf16.msra.mxu0 %v223
    %240 = vmatprep.subr.bf16.mxu0 0
    %241 = vmatpush1.bf16.msra.mxu0 %v222
    %242 = vmatprep.subr.bf16.mxu0 0
    %243 = vmatpush1.bf16.msra.mxu0 %v221
    %244 = vmatprep.subr.bf16.mxu0 0
    %245 = vmatpush1.bf16.msra.mxu0 %v220
    %246 = vmatprep.subr.bf16.mxu0 0
    %247 = vmatpush1.bf16.msra.mxu0 %v219
    %248 = vmatprep.subr.bf16.mxu0 0
    %249 = vmatpush1.bf16.msra.mxu0 %v218
    %250 = vmatprep.subr.bf16.mxu0 0
    %251 = vmatpush2.bf16.msra.mxu0 0
    %252 = vmatprep.subr.bf16.mxu0 0
    %253 = vmatpush2.bf16.msra.mxu0 0
    %254 = vmatprep.subr.bf16.mxu0 0
    %255 = vmatpush2.bf16.msra.mxu0 0
    %256 = vmatprep.subr.bf16.mxu0 0
    %257 = vmatpush2.bf16.msra.mxu0 0
    %258 = vmatprep.subr.bf16.mxu0 0
    %259 = vmatpush2.bf16.msra.mxu0 0
    %260 = vmatprep.subr.bf16.mxu0 0
    %261 = vmatpush2.bf16.msra.mxu0 0
    %262 = vmatprep.subr.bf16.mxu0 0
    %263 = vmatpush2.bf16.msra.mxu0 0
    %264 = vmatprep.subr.bf16.mxu0 0
    %265 = vmatpush2.bf16.msra.mxu0 0
    %266 = vmatprep.mubr.bf16.mxu0 0
    %267 = vmatmul.mubr.bf16.gmra.mxu0 %v164
    %v268 = vpop.f32.mrf.mxu0
    %v269 = vadd.f32 %v185, %v268
    %v270 = vpop.f32.mrf.mxu0
    %v271 = vpop.f32.mrf.mxu0
    %v272 = vpop.f32.mrf.mxu0
    %273 = vdwg.mxu0
    %v274 = vmax.f32 %v269, 0.0
    %v275 = vpack.c.bf16 %v274, %v274
    %s276 = scalar_lea.vmem [#allocation5], 128
    %v277 = vld [vmem:[%s276] sm:$0xf]
    %v278 = vld [vmem:[%s276 + $0x4] sm:$0xf]
    %v279 = vld [vmem:[%s276 + $0x8] sm:$0xf]
    %v280 = vld [vmem:[%s276 + $0xc] sm:$0xf]
    %v281 = vld [vmem:[%s276 + $0x10] sm:$0xf]
    %v282 = vld [vmem:[%s276 + $0x14] sm:$0xf]
    %v283 = vld [vmem:[%s276 + $0x18] sm:$0xf]
    %v284 = vld [vmem:[%s276 + $0x1c] sm:$0xf]
    %v285 = vld [vmem:[%s276 + $0x20] sm:$0xf]
    %v286 = vld [vmem:[%s276 + $0x24] sm:$0xf]
    %v287 = vld [vmem:[%s276 + $0x28] sm:$0xf]
    %v288 = vld [vmem:[%s276 + $0x2c] sm:$0xf]
    %v289 = vld [vmem:[%s276 + $0x30] sm:$0xf]
    %v290 = vld [vmem:[%s276 + $0x34] sm:$0xf]
    %v291 = vld [vmem:[%s276 + $0x38] sm:$0xf]
    %v292 = vld [vmem:[%s276 + $0x3c] sm:$0xf]
    %v293 = vlaneseq
    %v294 = vshrl.u32 %v293, 7
    %v295 = vsub.s32 2, %v294
    %v296 = vrot.slane %v54, %v295
    %v313 = vunpack.c.l.b16 %v277
    %v314 = vunpack.c.l.b16 %v278
    %v315 = vunpack.c.l.b16 %v279
    %v316 = vunpack.c.l.b16 %v280
    %v317 = vunpack.c.l.b16 %v281
    %v318 = vunpack.c.l.b16 %v282
    %v319 = vunpack.c.l.b16 %v283
    %v320 = vunpack.c.l.b16 %v284
    %v321 = vunpack.c.l.b16 %v285
    %v322 = vunpack.c.l.b16 %v286
    %v323 = vunpack.c.l.b16 %v287
    %v324 = vunpack.c.l.b16 %v288
    %v325 = vunpack.c.l.b16 %v289
    %v326 = vunpack.c.l.b16 %v290
    %v327 = vunpack.c.l.b16 %v291
    %v328 = vunpack.c.l.b16 %v292
    %v329 = vpack.c.b16 %v314, %v313
    %v330 = vpack.c.b16 %v316, %v315
    %v331 = vpack.c.b16 %v318, %v317
    %v332 = vpack.c.b16 %v320, %v319
    %v333 = vpack.c.b16 %v322, %v321
    %v334 = vpack.c.b16 %v324, %v323
    %v335 = vpack.c.b16 %v326, %v325
    %v336 = vpack.c.b16 %v328, %v327
    %345 = vmatprep.subr.bf16.mxu0 0
    %346 = vmatpush1.bf16.msra.mxu0 %v336
    %347 = vmatprep.subr.bf16.mxu0 0
    %348 = vmatpush1.bf16.msra.mxu0 %v335
    %349 = vmatprep.subr.bf16.mxu0 0
    %350 = vmatpush1.bf16.msra.mxu0 %v334
    %351 = vmatprep.subr.bf16.mxu0 0
    %352 = vmatpush1.bf16.msra.mxu0 %v333
    %353 = vmatprep.subr.bf16.mxu0 0
    %354 = vmatpush1.bf16.msra.mxu0 %v332
    %355 = vmatprep.subr.bf16.mxu0 0
    %356 = vmatpush1.bf16.msra.mxu0 %v331
    %357 = vmatprep.subr.bf16.mxu0 0
    %358 = vmatpush1.bf16.msra.mxu0 %v330
    %359 = vmatprep.subr.bf16.mxu0 0
    %360 = vmatpush1.bf16.msra.mxu0 %v329
    %361 = vmatprep.subr.bf16.mxu0 0
    %362 = vmatpush2.bf16.msra.mxu0 0
    %363 = vmatprep.subr.bf16.mxu0 0
    %364 = vmatpush2.bf16.msra.mxu0 0
    %365 = vmatprep.subr.bf16.mxu0 0
    %366 = vmatpush2.bf16.msra.mxu0 0
    %367 = vmatprep.subr.bf16.mxu0 0
    %368 = vmatpush2.bf16.msra.mxu0 0
    %369 = vmatprep.subr.bf16.mxu0 0
    %370 = vmatpush2.bf16.msra.mxu0 0
    %371 = vmatprep.subr.bf16.mxu0 0
    %372 = vmatpush2.bf16.msra.mxu0 0
    %373 = vmatprep.subr.bf16.mxu0 0
    %374 = vmatpush2.bf16.msra.mxu0 0
    %375 = vmatprep.subr.bf16.mxu0 0
    %376 = vmatpush2.bf16.msra.mxu0 0
    %377 = vmatprep.mubr.bf16.mxu0 0
    %378 = vmatmul.mubr.bf16.gmra.mxu0 %v275
    %v379 = vpop.f32.mrf.mxu0
    %v380 = vadd.f32 %v296, %v379
    %v381 = vpop.f32.mrf.mxu0
    %v382 = vpop.f32.mrf.mxu0
    %v383 = vpop.f32.mrf.mxu0
    %384 = vdwg.mxu0
    %v385 = vlaneseq
    %v386 = vshrl.u32 %v385, 7
    %v387 = vsub.s32 3, %v386
    %v388 = vrot.slane %v54, %v387
    %v389 = vmax.f32 %v388, %v380
    %v390 = vlaneseq
    %v391 = vshrl.u32 %v390, 7
    %v392 = vsub.s32 4, %v391
    %v393 = vrot.slane %v54, %v392
    %v394 = vmin.f32 %v393, %v389
    %395 = vst [vmem:[#allocation8] sm:$0xff] %v394
    // Predicated region
    $region26: #{tpu_custom_call.1} parent=1 // pred_check
      _
    $region27: #{tpu_custom_call.1} parent=1 // pred_check_branch
      %397 = sbr.rel (0) target = $region29
    $region28: #{tpu_custom_call.1} parent=1 // pred_region
      %s399 = ssub.s32 128, 128
      %400 = vsyncadd [#allocation4], %s399
      %s402 = sshll.u32 [#allocation8], 4
      %s403 = int_to_ptr.vmem [resolvable:$true] %s402
      %405 = dma.vmem_to_hbm [thread:$0]  %s403, 128, %s3, [#allocation4]
    $region29: #{tpu_custom_call.1} parent=1 // pred_fallthru
      _
    // Predicated region
    $region30: #{tpu_custom_call.1} parent=1 // pred_check
      _
    $region31: #{tpu_custom_call.1} parent=1 // pred_check_branch
      %407 = sbr.rel (0) target = $region33
    $region32: #{tpu_custom_call.1} parent=1 // pred_region
      %408 = dma.done [#allocation4], 128
    $region33: #{tpu_custom_call.1} parent=1 // pred_fallthru
      _
    %409 = vsyncpa [#allocation3], 1
    %410 = vsyncpa [#allocation6], 1
    %411 = vsyncpa [#allocation4], 1

</llo_original>
